<compile_context>
chip_gen: v7x
topology: tpu7x:2x2x1
jax: 0.10.0
libtpu: 0.0.40
codegen_flags: <defaults>
</compile_context>

<pallas_src>
import jax
import jax.numpy as jnp
from jax.experimental import pallas as pl
from jax.experimental.pallas import tpu as pltpu  # noqa: F401  (kept for TPU-kernel context)

# Explicit MXU precision choice (review item: make the trade-off deliberate).
# DEFAULT == single bf16 MXU pass; use jax.lax.Precision.HIGHEST if strict
# PyTorch-f32 parity of the recurrence matmul is required (3-6x per-step MXU
# latency on the serial chain). The pure-JAX reference uses the same setting.
MXU_PRECISION = jax.lax.Precision.DEFAULT


def _rnn_kernel(x_ref, wih_ref, whh_ref, bih_ref, bhh_ref, wfc_ref, bfc_ref,
                h0_ref, out_ref, hT_ref):
    """Sequential tanh RNN over time + per-timestep FC head, all in registers.

    x_ref   : (B, T)   inputs (input_size == 1, squeezed)
    wih_ref : (1, H)   W_ih row   (== W_ih^T since I == 1)
    whh_ref : (H, H)   W_hh, raw PyTorch layout (NOT transposed)
    bih_ref : (1, H)   b_ih
    bhh_ref : (1, H)   b_hh
    wfc_ref : (1, H)   W_fc row   (num_classes == 1)
    bfc_ref : (1, 1)   b_fc
    h0_ref  : (B, H)   initial hidden state
    out_ref : (B, T)   per-timestep Linear outputs (lane-dense, single store)
    hT_ref  : (B, H)   final hidden state
    """
    B, T = x_ref.shape

    # ---- One-time hoisted prep (all off the serial recurrence chain). ----
    whh = whh_ref[...]                        # (H, H)
    wih = wih_ref[...]                        # (1, H)
    wfc = wfc_ref[...]                        # (1, H)
    b = bih_ref[...] + bhh_ref[...]           # (1, H)  bias sum done in-kernel
    x = x_ref[...]                            # (B, T)

    # Hoisted input projection (I == 1): u_t[b, h] = x[b, t] * w_ih[h] + b[h].
    # Kept as T separate (B, H) register values ((T, B, H)-style layout) so
    # each unrolled step reads a whole value -- no mid-axis slice / relayout.
    u = [x[:, t:t + 1] * wih + b for t in range(T)]       # T x (B, H)

    # h @ W_hh^T without materializing W_hh^T anywhere: contract dim 1 of the
    # LHS with dim 1 of the (untransposed) RHS.
    nt_dims = (((1,), (1,)), ((), ()))

    # Lane one-hots used to scatter per-step FC outputs into a lane-dense
    # (B, T) register tile -> a single full store at the end.
    lane = jax.lax.broadcasted_iota(jnp.int32, (1, T), 1)

    h = h0_ref[...]                           # (B, H) f32
    out_acc = jnp.zeros((B, T), jnp.float32)

    # Fully unrolled recurrence (T static & small): only matmul -> add -> tanh
    # sits on the serial dependency chain. The FC head consumes h_t but feeds
    # nothing on the chain, so the scheduler overlaps it with the next step's
    # MXU latency. h_t never round-trips through VMEM scratch.
    for t in range(T):
        m = jax.lax.dot_general(h, whh, nt_dims,
                                preferred_element_type=jnp.float32,
                                precision=MXU_PRECISION)        # (B, H)
        h = jnp.tanh(u[t] + m)
        # Exact-f32 FC head (matches torch f32 Linear); off the serial chain.
        col = jnp.sum(h * wfc, axis=-1, keepdims=True)          # (B, 1)
        out_acc = out_acc + jnp.where(lane == t, col, 0.0)      # scatter lane t

    hT_ref[...] = h
    out_ref[...] = out_acc + bfc_ref[...]      # single lane-dense (B, T) store


def _full_spec(shape):
    # Gridless call -> a single program sees the whole array resident in VMEM.
    return pl.BlockSpec(shape, lambda: (0,) * len(shape))


@jax.jit
def rnn_forward(net, h_state, params):
    """net: (B, T, 1) batch-first, h_state: (1, B, H) or None.

    Returns (outs (B, T, 1), h_T (1, B, H)) matching the PyTorch module.
    """
    w_ih, w_hh, b_ih, b_hh, w_fc, b_fc = (
        params["w_ih"], params["w_hh"], params["b_ih"], params["b_hh"],
        params["w_fc"], params["b_fc"],
    )
    B, T, I = net.shape
    H = w_hh.shape[0]
    C = w_fc.shape[0]
    if I != 1 or C != 1:
        raise ValueError("kernel is specialized to input_size=1, num_classes=1")

    if h_state is None:
        h_state = jnp.zeros((1, B, H), jnp.float32)

    # Metadata-only reshapes; no transposes / arithmetic in the wrapper
    # (W_hh^T is handled by the kernel's NT contraction, bias sum in-kernel).
    x_bt = net.reshape(B, T).astype(jnp.float32)           # (B, T)
    wih_row = w_ih.reshape(1, H).astype(jnp.float32)       # (1, H)
    whh_raw = w_hh.astype(jnp.float32)                     # (H, H), untransposed
    bih_row = b_ih.reshape(1, H).astype(jnp.float32)       # (1, H)
    bhh_row = b_hh.reshape(1, H).astype(jnp.float32)       # (1, H)
    wfc_row = w_fc.reshape(1, H).astype(jnp.float32)       # (1, H)
    bfc = b_fc.reshape(1, 1).astype(jnp.float32)           # (1, 1)
    h0 = h_state.reshape(B, H).astype(jnp.float32)         # (B, H)

    out_bt, h_T = pl.pallas_call(
        _rnn_kernel,
        out_shape=(
            jax.ShapeDtypeStruct((B, T), jnp.float32),
            jax.ShapeDtypeStruct((B, H), jnp.float32),
        ),
        in_specs=[
            _full_spec((B, T)),
            _full_spec((1, H)),
            _full_spec((H, H)),
            _full_spec((1, H)),
            _full_spec((1, H)),
            _full_spec((1, H)),
            _full_spec((1, 1)),
            _full_spec((B, H)),
        ],
        out_specs=(
            _full_spec((B, T)),
            _full_spec((B, H)),
        ),
        # NOTE(scaling): a gridless single program is right at B=2, T=8, H=64
        # (latency-/serial-chain-bound). On v7x (2 TensorCores, 64 MiB VMEM /
        # 32 MiB default scoped limit): once B >= 16, add a leading batch grid
        # axis marked "parallel" (the recurrence is independent across batch)
        # so each TC runs half the batch; keep time inside the kernel (or as
        # an "arbitrary" axis with h carried in scratch). Re-budget the
        # resident 4*H^2-byte W_hh against v7x's halved VMEM when H grows;
        # there is no (T, B, H) scratch anymore, so VMEM scales only with
        # W_hh and the per-step tiles.
    )(x_bt, wih_row, whh_raw, bih_row, bhh_row, wfc_row, bfc, h0)

    outs = out_bt.reshape(B, T, 1)       # matches torch.stack(outs, dim=1)
    return outs, h_T.reshape(1, B, H)


def _init_params(key, input_size, hidden_size, num_classes):
    # Deterministic init mirroring PyTorch's U(-1/sqrt(H), 1/sqrt(H)) scheme.
    k = jax.random.split(key, 6)
    s = 1.0 / jnp.sqrt(hidden_size)
    return {
        "w_ih": jax.random.uniform(k[0], (hidden_size, input_size), jnp.float32, -s, s),
        "w_hh": jax.random.uniform(k[1], (hidden_size, hidden_size), jnp.float32, -s, s),
        "b_ih": jax.random.uniform(k[2], (hidden_size,), jnp.float32, -s, s),
        "b_hh": jax.random.uniform(k[3], (hidden_size,), jnp.float32, -s, s),
        "w_fc": jax.random.uniform(k[4], (num_classes, hidden_size), jnp.float32, -s, s),
        "b_fc": jax.random.uniform(k[5], (num_classes,), jnp.float32, -s, s),
    }


def _reference_forward(net, h_state, params):
    """Pure-JAX reference of the PyTorch module (same default matmul
    precision as the kernel's MXU_PRECISION)."""
    B, T, _ = net.shape
    H = params["w_hh"].shape[0]
    h = h_state.reshape(B, H)
    outs = []
    for t in range(T):
        x_t = net[:, t, :]
        h = jnp.tanh(x_t @ params["w_ih"].T + params["b_ih"]
                     + h @ params["w_hh"].T + params["b_hh"])
        outs.append(h @ params["w_fc"].T + params["b_fc"])
    return jnp.stack(outs, axis=1), h.reshape(1, B, H)


if __name__ == "__main__":
    input_size, hidden_size, num_classes = 1, 64, 1
    B, T = 2, 8

    key = jax.random.PRNGKey(0)
    kx, kp = jax.random.split(key)
    net = jax.random.normal(kx, (B, T, input_size), jnp.float32)   # e.g. sin samples
    h_state = jnp.zeros((1, B, hidden_size), jnp.float32)          # h_state=None -> zeros
    params = _init_params(kp, input_size, hidden_size, num_classes)

    outs, h_T = rnn_forward(net, h_state, params)
    jax.block_until_ready((outs, h_T))

    ref_outs, ref_hT = _reference_forward(net, h_state, params)
    assert outs.shape == (B, T, num_classes)
    assert h_T.shape == (1, B, hidden_size)
    assert jnp.allclose(outs, ref_outs, atol=1e-5, rtol=1e-5)
    assert jnp.allclose(h_T, ref_hT, atol=1e-5, rtol=1e-5)

    print("KERNEL_OK")
</pallas_src>

<mosaic_0001>
module attributes {stable_mosaic.version = 11 : i64} {
  func.func @_rnn_kernel(%arg0: memref<2x8xf32, #tpu.memory_space<vmem>>, %arg1: memref<1x64xf32, #tpu.memory_space<vmem>>, %arg2: memref<64x64xf32, #tpu.memory_space<vmem>>, %arg3: memref<1x64xf32, #tpu.memory_space<vmem>>, %arg4: memref<1x64xf32, #tpu.memory_space<vmem>>, %arg5: memref<1x64xf32, #tpu.memory_space<vmem>>, %arg6: memref<1x1xf32, #tpu.memory_space<vmem>>, %arg7: memref<2x64xf32, #tpu.memory_space<vmem>>, %arg8: memref<2x8xf32, #tpu.memory_space<vmem>>, %arg9: memref<2x64xf32, #tpu.memory_space<vmem>>) attributes {dimension_semantics = [], scalar_prefetch = 0 : i64, scratch_operands = 0 : i64, tpu.core_type = #tpu.core_type<tc>} {
    %c0 = arith.constant 0 : index
    %c0_0 = arith.constant 0 : index
    %0 = vector.load %arg2[%c0, %c0_0] : memref<64x64xf32, #tpu.memory_space<vmem>>, vector<64x64xf32>
    %c0_1 = arith.constant 0 : index
    %c0_2 = arith.constant 0 : index
    %1 = vector.load %arg1[%c0_1, %c0_2] : memref<1x64xf32, #tpu.memory_space<vmem>>, vector<1x64xf32>
    %c0_3 = arith.constant 0 : index
    %c0_4 = arith.constant 0 : index
    %2 = vector.load %arg5[%c0_3, %c0_4] : memref<1x64xf32, #tpu.memory_space<vmem>>, vector<1x64xf32>
    %c0_5 = arith.constant 0 : index
    %c0_6 = arith.constant 0 : index
    %3 = vector.load %arg3[%c0_5, %c0_6] : memref<1x64xf32, #tpu.memory_space<vmem>>, vector<1x64xf32>
    %c0_7 = arith.constant 0 : index
    %c0_8 = arith.constant 0 : index
    %4 = vector.load %arg4[%c0_7, %c0_8] : memref<1x64xf32, #tpu.memory_space<vmem>>, vector<1x64xf32>
    %5 = arith.addf %3, %4 : vector<1x64xf32>
    %c0_9 = arith.constant 0 : index
    %c0_10 = arith.constant 0 : index
    %6 = vector.load %arg0[%c0_9, %c0_10] : memref<2x8xf32, #tpu.memory_space<vmem>>, vector<2x8xf32>
    %7 = vector.extract_strided_slice %6 {offsets = [0, 0], sizes = [2, 1], strides = [1, 1]} : vector<2x8xf32> to vector<2x1xf32>
    %8 = vector.broadcast %7 : vector<2x1xf32> to vector<2x64xf32>
    %9 = vector.broadcast %1 : vector<1x64xf32> to vector<2x64xf32>
    %10 = arith.mulf %8, %9 : vector<2x64xf32>
    %11 = vector.broadcast %5 : vector<1x64xf32> to vector<2x64xf32>
    %12 = arith.addf %10, %11 : vector<2x64xf32>
    %13 = vector.extract_strided_slice %6 {offsets = [0, 1], sizes = [2, 1], strides = [1, 1]} : vector<2x8xf32> to vector<2x1xf32>
    %14 = vector.broadcast %13 : vector<2x1xf32> to vector<2x64xf32>
    %15 = vector.broadcast %1 : vector<1x64xf32> to vector<2x64xf32>
    %16 = arith.mulf %14, %15 : vector<2x64xf32>
    %17 = vector.broadcast %5 : vector<1x64xf32> to vector<2x64xf32>
    %18 = arith.addf %16, %17 : vector<2x64xf32>
    %19 = vector.extract_strided_slice %6 {offsets = [0, 2], sizes = [2, 1], strides = [1, 1]} : vector<2x8xf32> to vector<2x1xf32>
    %20 = vector.broadcast %19 : vector<2x1xf32> to vector<2x64xf32>
    %21 = vector.broadcast %1 : vector<1x64xf32> to vector<2x64xf32>
    %22 = arith.mulf %20, %21 : vector<2x64xf32>
    %23 = vector.broadcast %5 : vector<1x64xf32> to vector<2x64xf32>
    %24 = arith.addf %22, %23 : vector<2x64xf32>
    %25 = vector.extract_strided_slice %6 {offsets = [0, 3], sizes = [2, 1], strides = [1, 1]} : vector<2x8xf32> to vector<2x1xf32>
    %26 = vector.broadcast %25 : vector<2x1xf32> to vector<2x64xf32>
    %27 = vector.broadcast %1 : vector<1x64xf32> to vector<2x64xf32>
    %28 = arith.mulf %26, %27 : vector<2x64xf32>
    %29 = vector.broadcast %5 : vector<1x64xf32> to vector<2x64xf32>
    %30 = arith.addf %28, %29 : vector<2x64xf32>
    %31 = vector.extract_strided_slice %6 {offsets = [0, 4], sizes = [2, 1], strides = [1, 1]} : vector<2x8xf32> to vector<2x1xf32>
    %32 = vector.broadcast %31 : vector<2x1xf32> to vector<2x64xf32>
    %33 = vector.broadcast %1 : vector<1x64xf32> to vector<2x64xf32>
    %34 = arith.mulf %32, %33 : vector<2x64xf32>
    %35 = vector.broadcast %5 : vector<1x64xf32> to vector<2x64xf32>
    %36 = arith.addf %34, %35 : vector<2x64xf32>
    %37 = vector.extract_strided_slice %6 {offsets = [0, 5], sizes = [2, 1], strides = [1, 1]} : vector<2x8xf32> to vector<2x1xf32>
    %38 = vector.broadcast %37 : vector<2x1xf32> to vector<2x64xf32>
    %39 = vector.broadcast %1 : vector<1x64xf32> to vector<2x64xf32>
    %40 = arith.mulf %38, %39 : vector<2x64xf32>
    %41 = vector.broadcast %5 : vector<1x64xf32> to vector<2x64xf32>
    %42 = arith.addf %40, %41 : vector<2x64xf32>
    %43 = vector.extract_strided_slice %6 {offsets = [0, 6], sizes = [2, 1], strides = [1, 1]} : vector<2x8xf32> to vector<2x1xf32>
    %44 = vector.broadcast %43 : vector<2x1xf32> to vector<2x64xf32>
    %45 = vector.broadcast %1 : vector<1x64xf32> to vector<2x64xf32>
    %46 = arith.mulf %44, %45 : vector<2x64xf32>
    %47 = vector.broadcast %5 : vector<1x64xf32> to vector<2x64xf32>
    %48 = arith.addf %46, %47 : vector<2x64xf32>
    %49 = vector.extract_strided_slice %6 {offsets = [0, 7], sizes = [2, 1], strides = [1, 1]} : vector<2x8xf32> to vector<2x1xf32>
    %50 = vector.broadcast %49 : vector<2x1xf32> to vector<2x64xf32>
    %51 = vector.broadcast %1 : vector<1x64xf32> to vector<2x64xf32>
    %52 = arith.mulf %50, %51 : vector<2x64xf32>
    %53 = vector.broadcast %5 : vector<1x64xf32> to vector<2x64xf32>
    %54 = arith.addf %52, %53 : vector<2x64xf32>
    %55 = tpu.iota {dimensions = array<i32: 1>} : vector<1x8xi32>
    %c0_11 = arith.constant 0 : index
    %c0_12 = arith.constant 0 : index
    %56 = vector.load %arg7[%c0_11, %c0_12] : memref<2x64xf32, #tpu.memory_space<vmem>>, vector<2x64xf32>
    %cst = arith.constant 0.000000e+00 : f32
    %57 = vector.broadcast %cst : f32 to vector<2x8xf32>
    %cst_13 = arith.constant dense<0.000000e+00> : vector<2x64xf32>
    %58 = tpu.matmul %56, %0, %cst_13 {dimension_numbers = #tpu.dot_dimension_numbers<[1], [1], [0], [0], [0, 0, 1, 0], [], []>} : vector<2x64xf32>, vector<64x64xf32>, vector<2x64xf32> -> vector<2x64xf32>
    %59 = arith.addf %12, %58 : vector<2x64xf32>
    %60 = math.tanh %59 : vector<2x64xf32>
    %61 = vector.broadcast %2 : vector<1x64xf32> to vector<2x64xf32>
    %62 = arith.mulf %60, %61 : vector<2x64xf32>
    %cst_14 = arith.constant dense<0.000000e+00> : vector<2xf32>
    %63 = vector.multi_reduction <add>, %62, %cst_14 [1] : vector<2x64xf32> to vector<2xf32>
    %64 = vector.shape_cast %63 : vector<2xf32> to vector<2x1xf32>
    %c0_i32 = arith.constant 0 : i32
    %65 = vector.broadcast %c0_i32 : i32 to vector<1x8xi32>
    %66 = arith.cmpi eq, %55, %65 : vector<1x8xi32>
    %cst_15 = arith.constant 0.000000e+00 : f32
    %67 = vector.shape_cast %66 : vector<1x8xi1> to vector<1x8xi1>
    %68 = vector.broadcast %67 : vector<1x8xi1> to vector<2x8xi1>
    %69 = vector.shape_cast %64 : vector<2x1xf32> to vector<2x1xf32>
    %70 = vector.broadcast %69 : vector<2x1xf32> to vector<2x8xf32>
    %71 = vector.broadcast %cst_15 : f32 to vector<2x8xf32>
    %72 = arith.select %68, %70, %71 : vector<2x8xi1>, vector<2x8xf32>
    %73 = arith.addf %57, %72 : vector<2x8xf32>
    %cst_16 = arith.constant dense<0.000000e+00> : vector<2x64xf32>
    %74 = tpu.matmul %60, %0, %cst_16 {dimension_numbers = #tpu.dot_dimension_numbers<[1], [1], [0], [0], [0, 0, 1, 0], [], []>} : vector<2x64xf32>, vector<64x64xf32>, vector<2x64xf32> -> vector<2x64xf32>
    %75 = arith.addf %18, %74 : vector<2x64xf32>
    %76 = math.tanh %75 : vector<2x64xf32>
    %77 = vector.broadcast %2 : vector<1x64xf32> to vector<2x64xf32>
    %78 = arith.mulf %76, %77 : vector<2x64xf32>
    %cst_17 = arith.constant dense<0.000000e+00> : vector<2xf32>
    %79 = vector.multi_reduction <add>, %78, %cst_17 [1] : vector<2x64xf32> to vector<2xf32>
    %80 = vector.shape_cast %79 : vector<2xf32> to vector<2x1xf32>
    %c1_i32 = arith.constant 1 : i32
    %81 = vector.broadcast %c1_i32 : i32 to vector<1x8xi32>
    %82 = arith.cmpi eq, %55, %81 : vector<1x8xi32>
    %cst_18 = arith.constant 0.000000e+00 : f32
    %83 = vector.shape_cast %82 : vector<1x8xi1> to vector<1x8xi1>
    %84 = vector.broadcast %83 : vector<1x8xi1> to vector<2x8xi1>
    %85 = vector.shape_cast %80 : vector<2x1xf32> to vector<2x1xf32>
    %86 = vector.broadcast %85 : vector<2x1xf32> to vector<2x8xf32>
    %87 = vector.broadcast %cst_18 : f32 to vector<2x8xf32>
    %88 = arith.select %84, %86, %87 : vector<2x8xi1>, vector<2x8xf32>
    %89 = arith.addf %73, %88 : vector<2x8xf32>
    %cst_19 = arith.constant dense<0.000000e+00> : vector<2x64xf32>
    %90 = tpu.matmul %76, %0, %cst_19 {dimension_numbers = #tpu.dot_dimension_numbers<[1], [1], [0], [0], [0, 0, 1, 0], [], []>} : vector<2x64xf32>, vector<64x64xf32>, vector<2x64xf32> -> vector<2x64xf32>
    %91 = arith.addf %24, %90 : vector<2x64xf32>
    %92 = math.tanh %91 : vector<2x64xf32>
    %93 = vector.broadcast %2 : vector<1x64xf32> to vector<2x64xf32>
    %94 = arith.mulf %92, %93 : vector<2x64xf32>
    %cst_20 = arith.constant dense<0.000000e+00> : vector<2xf32>
    %95 = vector.multi_reduction <add>, %94, %cst_20 [1] : vector<2x64xf32> to vector<2xf32>
    %96 = vector.shape_cast %95 : vector<2xf32> to vector<2x1xf32>
    %c2_i32 = arith.constant 2 : i32
    %97 = vector.broadcast %c2_i32 : i32 to vector<1x8xi32>
    %98 = arith.cmpi eq, %55, %97 : vector<1x8xi32>
    %cst_21 = arith.constant 0.000000e+00 : f32
    %99 = vector.shape_cast %98 : vector<1x8xi1> to vector<1x8xi1>
    %100 = vector.broadcast %99 : vector<1x8xi1> to vector<2x8xi1>
    %101 = vector.shape_cast %96 : vector<2x1xf32> to vector<2x1xf32>
    %102 = vector.broadcast %101 : vector<2x1xf32> to vector<2x8xf32>
    %103 = vector.broadcast %cst_21 : f32 to vector<2x8xf32>
    %104 = arith.select %100, %102, %103 : vector<2x8xi1>, vector<2x8xf32>
    %105 = arith.addf %89, %104 : vector<2x8xf32>
    %cst_22 = arith.constant dense<0.000000e+00> : vector<2x64xf32>
    %106 = tpu.matmul %92, %0, %cst_22 {dimension_numbers = #tpu.dot_dimension_numbers<[1], [1], [0], [0], [0, 0, 1, 0], [], []>} : vector<2x64xf32>, vector<64x64xf32>, vector<2x64xf32> -> vector<2x64xf32>
    %107 = arith.addf %30, %106 : vector<2x64xf32>
    %108 = math.tanh %107 : vector<2x64xf32>
    %109 = vector.broadcast %2 : vector<1x64xf32> to vector<2x64xf32>
    %110 = arith.mulf %108, %109 : vector<2x64xf32>
    %cst_23 = arith.constant dense<0.000000e+00> : vector<2xf32>
    %111 = vector.multi_reduction <add>, %110, %cst_23 [1] : vector<2x64xf32> to vector<2xf32>
    %112 = vector.shape_cast %111 : vector<2xf32> to vector<2x1xf32>
    %c3_i32 = arith.constant 3 : i32
    %113 = vector.broadcast %c3_i32 : i32 to vector<1x8xi32>
    %114 = arith.cmpi eq, %55, %113 : vector<1x8xi32>
    %cst_24 = arith.constant 0.000000e+00 : f32
    %115 = vector.shape_cast %114 : vector<1x8xi1> to vector<1x8xi1>
    %116 = vector.broadcast %115 : vector<1x8xi1> to vector<2x8xi1>
    %117 = vector.shape_cast %112 : vector<2x1xf32> to vector<2x1xf32>
    %118 = vector.broadcast %117 : vector<2x1xf32> to vector<2x8xf32>
    %119 = vector.broadcast %cst_24 : f32 to vector<2x8xf32>
    %120 = arith.select %116, %118, %119 : vector<2x8xi1>, vector<2x8xf32>
    %121 = arith.addf %105, %120 : vector<2x8xf32>
    %cst_25 = arith.constant dense<0.000000e+00> : vector<2x64xf32>
    %122 = tpu.matmul %108, %0, %cst_25 {dimension_numbers = #tpu.dot_dimension_numbers<[1], [1], [0], [0], [0, 0, 1, 0], [], []>} : vector<2x64xf32>, vector<64x64xf32>, vector<2x64xf32> -> vector<2x64xf32>
    %123 = arith.addf %36, %122 : vector<2x64xf32>
    %124 = math.tanh %123 : vector<2x64xf32>
    %125 = vector.broadcast %2 : vector<1x64xf32> to vector<2x64xf32>
    %126 = arith.mulf %124, %125 : vector<2x64xf32>
    %cst_26 = arith.constant dense<0.000000e+00> : vector<2xf32>
    %127 = vector.multi_reduction <add>, %126, %cst_26 [1] : vector<2x64xf32> to vector<2xf32>
    %128 = vector.shape_cast %127 : vector<2xf32> to vector<2x1xf32>
    %c4_i32 = arith.constant 4 : i32
    %129 = vector.broadcast %c4_i32 : i32 to vector<1x8xi32>
    %130 = arith.cmpi eq, %55, %129 : vector<1x8xi32>
    %cst_27 = arith.constant 0.000000e+00 : f32
    %131 = vector.shape_cast %130 : vector<1x8xi1> to vector<1x8xi1>
    %132 = vector.broadcast %131 : vector<1x8xi1> to vector<2x8xi1>
    %133 = vector.shape_cast %128 : vector<2x1xf32> to vector<2x1xf32>
    %134 = vector.broadcast %133 : vector<2x1xf32> to vector<2x8xf32>
    %135 = vector.broadcast %cst_27 : f32 to vector<2x8xf32>
    %136 = arith.select %132, %134, %135 : vector<2x8xi1>, vector<2x8xf32>
    %137 = arith.addf %121, %136 : vector<2x8xf32>
    %cst_28 = arith.constant dense<0.000000e+00> : vector<2x64xf32>
    %138 = tpu.matmul %124, %0, %cst_28 {dimension_numbers = #tpu.dot_dimension_numbers<[1], [1], [0], [0], [0, 0, 1, 0], [], []>} : vector<2x64xf32>, vector<64x64xf32>, vector<2x64xf32> -> vector<2x64xf32>
    %139 = arith.addf %42, %138 : vector<2x64xf32>
    %140 = math.tanh %139 : vector<2x64xf32>
    %141 = vector.broadcast %2 : vector<1x64xf32> to vector<2x64xf32>
    %142 = arith.mulf %140, %141 : vector<2x64xf32>
    %cst_29 = arith.constant dense<0.000000e+00> : vector<2xf32>
    %143 = vector.multi_reduction <add>, %142, %cst_29 [1] : vector<2x64xf32> to vector<2xf32>
    %144 = vector.shape_cast %143 : vector<2xf32> to vector<2x1xf32>
    %c5_i32 = arith.constant 5 : i32
    %145 = vector.broadcast %c5_i32 : i32 to vector<1x8xi32>
    %146 = arith.cmpi eq, %55, %145 : vector<1x8xi32>
    %cst_30 = arith.constant 0.000000e+00 : f32
    %147 = vector.shape_cast %146 : vector<1x8xi1> to vector<1x8xi1>
    %148 = vector.broadcast %147 : vector<1x8xi1> to vector<2x8xi1>
    %149 = vector.shape_cast %144 : vector<2x1xf32> to vector<2x1xf32>
    %150 = vector.broadcast %149 : vector<2x1xf32> to vector<2x8xf32>
    %151 = vector.broadcast %cst_30 : f32 to vector<2x8xf32>
    %152 = arith.select %148, %150, %151 : vector<2x8xi1>, vector<2x8xf32>
    %153 = arith.addf %137, %152 : vector<2x8xf32>
    %cst_31 = arith.constant dense<0.000000e+00> : vector<2x64xf32>
    %154 = tpu.matmul %140, %0, %cst_31 {dimension_numbers = #tpu.dot_dimension_numbers<[1], [1], [0], [0], [0, 0, 1, 0], [], []>} : vector<2x64xf32>, vector<64x64xf32>, vector<2x64xf32> -> vector<2x64xf32>
    %155 = arith.addf %48, %154 : vector<2x64xf32>
    %156 = math.tanh %155 : vector<2x64xf32>
    %157 = vector.broadcast %2 : vector<1x64xf32> to vector<2x64xf32>
    %158 = arith.mulf %156, %157 : vector<2x64xf32>
    %cst_32 = arith.constant dense<0.000000e+00> : vector<2xf32>
    %159 = vector.multi_reduction <add>, %158, %cst_32 [1] : vector<2x64xf32> to vector<2xf32>
    %160 = vector.shape_cast %159 : vector<2xf32> to vector<2x1xf32>
    %c6_i32 = arith.constant 6 : i32
    %161 = vector.broadcast %c6_i32 : i32 to vector<1x8xi32>
    %162 = arith.cmpi eq, %55, %161 : vector<1x8xi32>
    %cst_33 = arith.constant 0.000000e+00 : f32
    %163 = vector.shape_cast %162 : vector<1x8xi1> to vector<1x8xi1>
    %164 = vector.broadcast %163 : vector<1x8xi1> to vector<2x8xi1>
    %165 = vector.shape_cast %160 : vector<2x1xf32> to vector<2x1xf32>
    %166 = vector.broadcast %165 : vector<2x1xf32> to vector<2x8xf32>
    %167 = vector.broadcast %cst_33 : f32 to vector<2x8xf32>
    %168 = arith.select %164, %166, %167 : vector<2x8xi1>, vector<2x8xf32>
    %169 = arith.addf %153, %168 : vector<2x8xf32>
    %cst_34 = arith.constant dense<0.000000e+00> : vector<2x64xf32>
    %170 = tpu.matmul %156, %0, %cst_34 {dimension_numbers = #tpu.dot_dimension_numbers<[1], [1], [0], [0], [0, 0, 1, 0], [], []>} : vector<2x64xf32>, vector<64x64xf32>, vector<2x64xf32> -> vector<2x64xf32>
    %171 = arith.addf %54, %170 : vector<2x64xf32>
    %172 = math.tanh %171 : vector<2x64xf32>
    %173 = vector.broadcast %2 : vector<1x64xf32> to vector<2x64xf32>
    %174 = arith.mulf %172, %173 : vector<2x64xf32>
    %cst_35 = arith.constant dense<0.000000e+00> : vector<2xf32>
    %175 = vector.multi_reduction <add>, %174, %cst_35 [1] : vector<2x64xf32> to vector<2xf32>
    %176 = vector.shape_cast %175 : vector<2xf32> to vector<2x1xf32>
    %c7_i32 = arith.constant 7 : i32
    %177 = vector.broadcast %c7_i32 : i32 to vector<1x8xi32>
    %178 = arith.cmpi eq, %55, %177 : vector<1x8xi32>
    %cst_36 = arith.constant 0.000000e+00 : f32
    %179 = vector.shape_cast %178 : vector<1x8xi1> to vector<1x8xi1>
    %180 = vector.broadcast %179 : vector<1x8xi1> to vector<2x8xi1>
    %181 = vector.shape_cast %176 : vector<2x1xf32> to vector<2x1xf32>
    %182 = vector.broadcast %181 : vector<2x1xf32> to vector<2x8xf32>
    %183 = vector.broadcast %cst_36 : f32 to vector<2x8xf32>
    %184 = arith.select %180, %182, %183 : vector<2x8xi1>, vector<2x8xf32>
    %185 = arith.addf %169, %184 : vector<2x8xf32>
    %c0_37 = arith.constant 0 : index
    %c0_38 = arith.constant 0 : index
    %186 = vector.load %arg9[%c0_37, %c0_38] : memref<2x64xf32, #tpu.memory_space<vmem>>, vector<2x64xf32>
    tpu.vector_store %arg9[%c0_37, %c0_38], %172 {strides = array<i32>} : memref<2x64xf32, #tpu.memory_space<vmem>>, vector<2x64xf32>,
    %c0_39 = arith.constant 0 : index
    %c0_40 = arith.constant 0 : index
    %187 = vector.load %arg6[%c0_39, %c0_40] : memref<1x1xf32, #tpu.memory_space<vmem>>, vector<1x1xf32>
    %188 = vector.broadcast %187 : vector<1x1xf32> to vector<2x8xf32>
    %189 = arith.addf %185, %188 : vector<2x8xf32>
    %c0_41 = arith.constant 0 : index
    %c0_42 = arith.constant 0 : index
    %190 = vector.load %arg8[%c0_41, %c0_42] : memref<2x8xf32, #tpu.memory_space<vmem>>, vector<2x8xf32>
    tpu.vector_store %arg8[%c0_41, %c0_42], %189 {strides = array<i32>} : memref<2x8xf32, #tpu.memory_space<vmem>>, vector<2x8xf32>,
    return
  }
}

</mosaic_0001>

<llo_original>
// kernel: rnn_forward.1
$region0: #{rnn_forward.1}
  #allocation0 [shape = 'u32[]', space=smem, size = 0x4, offset = 0x4, fixed_abs, tag = 'smem constant byte address 0x4 - core index']
  #allocation1 [shape = 'u32[144,128]{1,0:T(1,128)}', space=vmem, size = 0x12000, scoped, tag = 'internal scratch']
  #allocation2 [shape = 'f32[1,1]{1,0:T(1,128)S(1)}', space=vmem, size = 0x200, scoped, tag = 'scoped memory for rnn_forward.1']
  %s0 = inlined_call_operand.vmem [shape: f32[2,8], index: 0, kind: input, shape index: {}]
  %s1 = inlined_call_operand.vmem [shape: f32[1,64], index: 1, kind: input, shape index: {}]
  %s2 = inlined_call_operand.hbm [shape: f32[64,64], index: 2, kind: input, shape index: {}]
  %s3 = inlined_call_operand.vmem [shape: f32[1,64], index: 3, kind: input, shape index: {}]
  %s4 = inlined_call_operand.vmem [shape: f32[1,64], index: 4, kind: input, shape index: {}]
  %s5 = inlined_call_operand.vmem [shape: f32[1,64], index: 5, kind: input, shape index: {}]
  %s6 = inlined_call_operand.<no memory space> [shape: f32[1,1], index: 6, kind: input, shape index: {}]
  %s7 = inlined_call_operand.vmem [shape: f32[2,64], index: 7, kind: input, shape index: {}]
  %s8 = inlined_call_operand.hbm [shape: f32[2,8], index: 8, kind: output, shape index: {0}]
  %s9 = inlined_call_operand.hbm [shape: f32[2,64], index: 9, kind: output, shape index: {1}]
  %10 = xla_tuple %s8, %s9
  %s11 = sld [smem:[#allocation0]]
  $region54: #{rnn_forward.1} parent=0
    _
  %s13 = ssub.s32 1, %s11
  %s14 = scalar_select 0, %s13, %s11
  %v15 = vstv %s6
  %16 = vst [vmem:[#allocation2] sm:$0x1] %v15
  $region1: #{rnn_forward.1} parent=0
    #allocation3 [shape = 'u8[32768]{0}', space=vmem, size = 0x8000, scoped, tag = 'input window, operand 2, single buffered']
    #allocation4 [shape = 's32[1]{0}', space=sflag, size = 0x4, scoped, tag = 'scoped memory for rnn_forward.1']
    #allocation5 [shape = 's32[1]{0}', space=sflag, size = 0x4, scoped, tag = 'scoped memory for rnn_forward.1']
    #allocation6 [shape = 'u8[1024]{0}', space=vmem, size = 0x400, scoped, tag = 'output window, operand 0, single buffered']
    #allocation7 [shape = 'u8[1024]{0}', space=vmem, size = 0x400, scoped, tag = 'output window, operand 1, single buffered']
    #allocation8 [shape = 's32[1]{0}', space=sflag, size = 0x4, scoped, tag = 'scoped memory for rnn_forward.1']
    %17 = vsyncpa [#allocation4], 0
    %18 = vsyncpa [#allocation5], 0
    %19 = vsyncpa [#allocation8], 0
    // Predicated region
    $region2: #{rnn_forward.1} parent=1 // pred_check
      _
    $region3: #{rnn_forward.1} parent=1 // pred_check_branch
      %21 = sbr.rel (0) target = $region5
    $region4: #{rnn_forward.1} parent=1 // pred_region
      _
    $region5: #{rnn_forward.1} parent=1 // pred_fallthru
      _
    // Predicated region
    $region6: #{rnn_forward.1} parent=1 // pred_check
      _
    $region7: #{rnn_forward.1} parent=1 // pred_check_branch
      %23 = sbr.rel (0) target = $region9
    $region8: #{rnn_forward.1} parent=1 // pred_region
      _
    $region9: #{rnn_forward.1} parent=1 // pred_fallthru
      _
    // Predicated region
    $region10: #{rnn_forward.1} parent=1 // pred_check
      _
    $region11: #{rnn_forward.1} parent=1 // pred_check_branch
      %25 = sbr.rel (0) target = $region13
    $region12: #{rnn_forward.1} parent=1 // pred_region
      %s27 = ssub.s32 1024, 1024
      %28 = vsyncadd [#allocation4], %s27
      %s29 = sshll.u32 [#allocation3], 4
      %s30 = int_to_ptr.vmem [resolvable:$true] %s29
      %35 = dma.hbm_to_vmem [thread:$0]  %s2, 1024, %s30, [#allocation4], 128, 128, 8
    $region13: #{rnn_forward.1} parent=1 // pred_fallthru
      _
    // Predicated region
    $region14: #{rnn_forward.1} parent=1 // pred_check
      _
    $region15: #{rnn_forward.1} parent=1 // pred_check_branch
      %37 = sbr.rel (0) target = $region17
    $region16: #{rnn_forward.1} parent=1 // pred_region
      _
    $region17: #{rnn_forward.1} parent=1 // pred_fallthru
      _
    // Predicated region
    $region18: #{rnn_forward.1} parent=1 // pred_check
      _
    $region19: #{rnn_forward.1} parent=1 // pred_check_branch
      %39 = sbr.rel (0) target = $region21
    $region20: #{rnn_forward.1} parent=1 // pred_region
      _
    $region21: #{rnn_forward.1} parent=1 // pred_fallthru
      _
    // Predicated region
    $region22: #{rnn_forward.1} parent=1 // pred_check
      _
    $region23: #{rnn_forward.1} parent=1 // pred_check_branch
      %41 = sbr.rel (0) target = $region25
    $region24: #{rnn_forward.1} parent=1 // pred_region
      _
    $region25: #{rnn_forward.1} parent=1 // pred_fallthru
      _
    // Predicated region
    $region26: #{rnn_forward.1} parent=1 // pred_check
      _
    $region27: #{rnn_forward.1} parent=1 // pred_check_branch
      %43 = sbr.rel (0) target = $region29
    $region28: #{rnn_forward.1} parent=1 // pred_region
      _
    $region29: #{rnn_forward.1} parent=1 // pred_fallthru
      _
    // Predicated region
    $region30: #{rnn_forward.1} parent=1 // pred_check
      _
    $region31: #{rnn_forward.1} parent=1 // pred_check_branch
      %45 = sbr.rel (0) target = $region33
    $region32: #{rnn_forward.1} parent=1 // pred_region
      _
    $region33: #{rnn_forward.1} parent=1 // pred_fallthru
      _
    // Predicated region
    $region34: #{rnn_forward.1} parent=1 // pred_check
      _
    $region35: #{rnn_forward.1} parent=1 // pred_check_branch
      %47 = sbr.rel (0) target = $region37
    $region36: #{rnn_forward.1} parent=1 // pred_region
      %48 = dma.done [#allocation4], 1024
    $region37: #{rnn_forward.1} parent=1 // pred_fallthru
      _
    %v49 = vld [vmem:[#allocation3] sm:$0xff]
    %v50 = vld [vmem:[#allocation3 + $0x8] sm:$0xff]
    %v51 = vld [vmem:[#allocation3 + $0x10] sm:$0xff]
    %v52 = vld [vmem:[#allocation3 + $0x18] sm:$0xff]
    %v53 = vld [vmem:[#allocation3 + $0x20] sm:$0xff]
    %v54 = vld [vmem:[#allocation3 + $0x28] sm:$0xff]
    %v55 = vld [vmem:[#allocation3 + $0x30] sm:$0xff]
    %v56 = vld [vmem:[#allocation3 + $0x38] sm:$0xff]
    %v57 = vld [vmem:[%s1] sm:$0x1]
    %v58 = vld [vmem:[%s5] sm:$0x1]
    %v59 = vld [vmem:[%s3] sm:$0x1]
    %v60 = vld [vmem:[%s4] sm:$0x1]
    %v61 = vadd.f32 %v59, %v60
    %v62 = vld [vmem:[%s0] sm:$0x3]
    %64 = vset.pattern.permute.xlu0 0
    %65 = vperm.xlu0 %64, %v62
    %v66 = vpop.permute.xlu0 %65
    %v69 = vlaneseq
    %v70 = vshrl.u32 %v69, 7
    %v71 = vsub.s32 0, %v70
    %v72 = vrot.slane %v57, %v71
    %v74 = vmul.f32 %v66, %v72
    %v76 = vlaneseq
    %v77 = vshrl.u32 %v76, 7
    %v78 = vsub.s32 0, %v77
    %v79 = vrot.slane %v61, %v78
    %v81 = vadd.f32 %v74, %v79
    %82 = vset.pattern.permute.xlu0 1
    %83 = vperm.xlu0 %82, %v62
    %v84 = vpop.permute.xlu0 %83
    %v86 = vmul.f32 %v84, %v72
    %v87 = vadd.f32 %v86, %v79
    %88 = vset.pattern.permute.xlu0 2
    %89 = vperm.xlu0 %88, %v62
    %v90 = vpop.permute.xlu0 %89
    %v92 = vmul.f32 %v90, %v72
    %v93 = vadd.f32 %v92, %v79
    %94 = vset.pattern.permute.xlu0 3
    %95 = vperm.xlu0 %94, %v62
    %v96 = vpop.permute.xlu0 %95
    %v98 = vmul.f32 %v96, %v72
    %v99 = vadd.f32 %v98, %v79
    %100 = vset.pattern.permute.xlu0 4
    %101 = vperm.xlu0 %100, %v62
    %v102 = vpop.permute.xlu0 %101
    %v104 = vmul.f32 %v102, %v72
    %v105 = vadd.f32 %v104, %v79
    %106 = vset.pattern.permute.xlu0 5
    %107 = vperm.xlu0 %106, %v62
    %v108 = vpop.permute.xlu0 %107
    %v110 = vmul.f32 %v108, %v72
    %v111 = vadd.f32 %v110, %v79
    %112 = vset.pattern.permute.xlu0 6
    %113 = vperm.xlu0 %112, %v62
    %v114 = vpop.permute.xlu0 %113
    %v116 = vmul.f32 %v114, %v72
    %v117 = vadd.f32 %v116, %v79
    %118 = vset.pattern.permute.xlu0 7
    %119 = vperm.xlu0 %118, %v62
    %v120 = vpop.permute.xlu0 %119
    %v122 = vmul.f32 %v120, %v72
    %v123 = vadd.f32 %v122, %v79
    %v124 = vlaneseq
    %v125 = vand.u32 %v124, 127
    %v126 = vld [vmem:[%s7] sm:$0x3]
    %vm127 = vcmask 523264
    %v129 = vsel %vm127, %v126, 0
    %v132 = vsel %vm127, %v49, 0
    %v135 = vsel %vm127, %v50, 0
    %v138 = vsel %vm127, %v51, 0
    %v141 = vsel %vm127, %v52, 0
    %v144 = vsel %vm127, %v53, 0
    %v147 = vsel %vm127, %v54, 0
    %v150 = vsel %vm127, %v55, 0
    %v153 = vsel %vm127, %v56, 0
    %155 = vmatprep.subr.mxu0 0.0
    %156 = vmatpush1.xpose.msra.mxu0 %v132
    %157 = vmatprep.subr.mxu0 0.0
    %158 = vmatpush1.xpose.msra.mxu0 %v135
    %159 = vmatprep.subr.mxu0 0.0
    %160 = vmatpush1.xpose.msra.mxu0 %v138
    %161 = vmatprep.subr.mxu0 0.0
    %162 = vmatpush1.xpose.msra.mxu0 %v141
    %163 = vmatprep.subr.mxu0 0.0
    %164 = vmatpush1.xpose.msra.mxu0 %v144
    %165 = vmatprep.subr.mxu0 0.0
    %166 = vmatpush1.xpose.msra.mxu0 %v147
    %167 = vmatprep.subr.mxu0 0.0
    %168 = vmatpush1.xpose.msra.mxu0 %v150
    %169 = vmatprep.subr.mxu0 0.0
    %170 = vmatpush1.xpose.msra.mxu0 %v153
    %171 = vmatprep.subr.mxu0 0.0
    %172 = vmatpush1.xpose.msra.mxu0 0.0
    %173 = vmatprep.subr.mxu0 0.0
    %174 = vmatpush1.xpose.msra.mxu0 0.0
    %175 = vmatprep.subr.mxu0 0.0
    %176 = vmatpush1.xpose.msra.mxu0 0.0
    %177 = vmatprep.subr.mxu0 0.0
    %178 = vmatpush1.xpose.msra.mxu0 0.0
    %179 = vmatprep.subr.mxu0 0.0
    %180 = vmatpush1.xpose.msra.mxu0 0.0
    %181 = vmatprep.subr.mxu0 0.0
    %182 = vmatpush1.xpose.msra.mxu0 0.0
    %183 = vmatprep.subr.mxu0 0.0
    %184 = vmatpush1.xpose.msra.mxu0 0.0
    %185 = vmatprep.subr.mxu0 0.0
    %186 = vmatpush1.xpose.msra.mxu0 0.0
    %187 = vmatprep.subr.mxu0 0.0
    %188 = vmatpush1.xpose.msra.mxu0 0.0
    %189 = vmatprep.subr.mxu0 0.0
    %190 = vmatpush1.xpose.msra.mxu0 0.0
    %191 = vmatprep.subr.mxu0 0.0
    %192 = vmatpush1.xpose.msra.mxu0 0.0
    %193 = vmatprep.subr.mxu0 0.0
    %194 = vmatpush1.xpose.msra.mxu0 0.0
    %195 = vmatprep.subr.mxu0 0.0
    %196 = vmatpush1.xpose.msra.mxu0 0.0
    %197 = vmatprep.subr.mxu0 0.0
    %198 = vmatpush1.xpose.msra.mxu0 0.0
    %199 = vmatprep.subr.mxu0 0.0
    %200 = vmatpush1.xpose.msra.mxu0 0.0
    %201 = vmatprep.subr.mxu0 0.0
    %202 = vmatpush1.xpose.msra.mxu0 0.0
    %203 = vmatprep.subr.mxu0 0.0
    %204 = vmatpush1.xpose.msra.mxu0 0.0
    %205 = vmatprep.subr.mxu0 0.0
    %206 = vmatpush1.xpose.msra.mxu0 0.0
    %207 = vmatprep.subr.mxu0 0.0
    %208 = vmatpush1.xpose.msra.mxu0 0.0
    %209 = vmatprep.subr.mxu0 0.0
    %210 = vmatpush1.xpose.msra.mxu0 0.0
    %211 = vmatprep.subr.mxu0 0.0
    %212 = vmatpush1.xpose.msra.mxu0 0.0
    %213 = vmatprep.subr.mxu0 0.0
    %214 = vmatpush1.xpose.msra.mxu0 0.0
    %215 = vmatprep.subr.mxu0 0.0
    %216 = vmatpush1.xpose.msra.mxu0 0.0
    %217 = vmatprep.subr.mxu0 0.0
    %218 = vmatpush1.xpose.msra.mxu0 0.0
    %219 = vmatprep.mubr.f32.mxu0 0.0
    %220 = vmatmul.mubr.f32.gmra.mrb[0].mxu0 %v129
    %v221 = vpop.f32.mrb[0].mxu0
    %v222 = vadd.f32 0.0, %v221
    %v223 = vpop.f32.mrb[0].mxu0
    %224 = vdwg.mxu0
    %v225 = vadd.f32 %v81, %v222
    %v226 = vtanh.pop %v225
    %v228 = vlaneseq
    %v229 = vshrl.u32 %v228, 7
    %v230 = vsub.s32 0, %v229
    %v231 = vrot.slane %v58, %v230
    %v233 = vmul.f32 %v226, %v231
    %vm234 = vcmask 517120
    %v235 = vsel %vm234, %v233, 0.0
    %236 = vadd.xlane.f32.xlu0 %v235
    %v237 = vpop.xlane.xlu0 %236
    %vm238 = vcmp.eq.s32.totalorder %v125, 0
    %v239 = vsel %vm238, 1, 0
    %vm240 = vcmp.eq.s32.totalorder %v239, 1
    %v241 = vsel %vm240, %v237, 0.0
    %v242 = vadd.f32 %v241, 0.0
    %v244 = vsel %vm127, %v226, 0
    %246 = vmatprep.subr.mxu0 0.0
    %247 = vmatpush1.xpose.msra.mxu0 %v132
    %248 = vmatprep.subr.mxu0 0.0
    %249 = vmatpush1.xpose.msra.mxu0 %v135
    %250 = vmatprep.subr.mxu0 0.0
    %251 = vmatpush1.xpose.msra.mxu0 %v138
    %252 = vmatprep.subr.mxu0 0.0
    %253 = vmatpush1.xpose.msra.mxu0 %v141
    %254 = vmatprep.subr.mxu0 0.0
    %255 = vmatpush1.xpose.msra.mxu0 %v144
    %256 = vmatprep.subr.mxu0 0.0
    %257 = vmatpush1.xpose.msra.mxu0 %v147
    %258 = vmatprep.subr.mxu0 0.0
    %259 = vmatpush1.xpose.msra.mxu0 %v150
    %260 = vmatprep.subr.mxu0 0.0
    %261 = vmatpush1.xpose.msra.mxu0 %v153
    %262 = vmatprep.subr.mxu0 0.0
    %263 = vmatpush1.xpose.msra.mxu0 0.0
    %264 = vmatprep.subr.mxu0 0.0
    %265 = vmatpush1.xpose.msra.mxu0 0.0
    %266 = vmatprep.subr.mxu0 0.0
    %267 = vmatpush1.xpose.msra.mxu0 0.0
    %268 = vmatprep.subr.mxu0 0.0
    %269 = vmatpush1.xpose.msra.mxu0 0.0
    %270 = vmatprep.subr.mxu0 0.0
    %271 = vmatpush1.xpose.msra.mxu0 0.0
    %272 = vmatprep.subr.mxu0 0.0
    %273 = vmatpush1.xpose.msra.mxu0 0.0
    %274 = vmatprep.subr.mxu0 0.0
    %275 = vmatpush1.xpose.msra.mxu0 0.0
    %276 = vmatprep.subr.mxu0 0.0
    %277 = vmatpush1.xpose.msra.mxu0 0.0
    %278 = vmatprep.subr.mxu0 0.0
    %279 = vmatpush1.xpose.msra.mxu0 0.0
    %280 = vmatprep.subr.mxu0 0.0
    %281 = vmatpush1.xpose.msra.mxu0 0.0
    %282 = vmatprep.subr.mxu0 0.0
    %283 = vmatpush1.xpose.msra.mxu0 0.0
    %284 = vmatprep.subr.mxu0 0.0
    %285 = vmatpush1.xpose.msra.mxu0 0.0
    %286 = vmatprep.subr.mxu0 0.0
    %287 = vmatpush1.xpose.msra.mxu0 0.0
    %288 = vmatprep.subr.mxu0 0.0
    %289 = vmatpush1.xpose.msra.mxu0 0.0
    %290 = vmatprep.subr.mxu0 0.0
    %291 = vmatpush1.xpose.msra.mxu0 0.0
    %292 = vmatprep.subr.mxu0 0.0
    %293 = vmatpush1.xpose.msra.mxu0 0.0
    %294 = vmatprep.subr.mxu0 0.0
    %295 = vmatpush1.xpose.msra.mxu0 0.0
    %296 = vmatprep.subr.mxu0 0.0
    %297 = vmatpush1.xpose.msra.mxu0 0.0
    %298 = vmatprep.subr.mxu0 0.0
    %299 = vmatpush1.xpose.msra.mxu0 0.0
    %300 = vmatprep.subr.mxu0 0.0
    %301 = vmatpush1.xpose.msra.mxu0 0.0
    %302 = vmatprep.subr.mxu0 0.0
    %303 = vmatpush1.xpose.msra.mxu0 0.0
    %304 = vmatprep.subr.mxu0 0.0
    %305 = vmatpush1.xpose.msra.mxu0 0.0
    %306 = vmatprep.subr.mxu0 0.0
    %307 = vmatpush1.xpose.msra.mxu0 0.0
    %308 = vmatprep.subr.mxu0 0.0
    %309 = vmatpush1.xpose.msra.mxu0 0.0
    %310 = vmatprep.mubr.f32.mxu0 0.0
    %311 = vmatmul.mubr.f32.gmra.mrb[0].mxu0 %v244
    %v312 = vpop.f32.mrb[0].mxu0
    %v313 = vadd.f32 0.0, %v312
    %v314 = vpop.f32.mrb[0].mxu0
    %315 = vdwg.mxu0
    %v316 = vadd.f32 %v87, %v313
    %v317 = vtanh.pop %v316
    %v318 = vmul.f32 %v317, %v231
    %v319 = vsel %vm234, %v318, 0.0
    %320 = vadd.xlane.f32.xlu0 %v319
    %v321 = vpop.xlane.xlu0 %320
    %vm322 = vcmp.eq.s32.totalorder %v125, 1
    %v323 = vsel %vm322, 1, 0
    %vm324 = vcmp.eq.s32.totalorder %v323, 1
    %v325 = vsel %vm324, %v321, 0.0
    %v326 = vadd.f32 %v242, %v325
    %v328 = vsel %vm127, %v317, 0
    %330 = vmatprep.subr.mxu0 0.0
    %331 = vmatpush1.xpose.msra.mxu0 %v132
    %332 = vmatprep.subr.mxu0 0.0
    %333 = vmatpush1.xpose.msra.mxu0 %v135
    %334 = vmatprep.subr.mxu0 0.0
    %335 = vmatpush1.xpose.msra.mxu0 %v138
    %336 = vmatprep.subr.mxu0 0.0
    %337 = vmatpush1.xpose.msra.mxu0 %v141
    %338 = vmatprep.subr.mxu0 0.0
    %339 = vmatpush1.xpose.msra.mxu0 %v144
    %340 = vmatprep.subr.mxu0 0.0
    %341 = vmatpush1.xpose.msra.mxu0 %v147
    %342 = vmatprep.subr.mxu0 0.0
    %343 = vmatpush1.xpose.msra.mxu0 %v150
    %344 = vmatprep.subr.mxu0 0.0
    %345 = vmatpush1.xpose.msra.mxu0 %v153
    %346 = vmatprep.subr.mxu0 0.0
    %347 = vmatpush1.xpose.msra.mxu0 0.0
    %348 = vmatprep.subr.mxu0 0.0
    %349 = vmatpush1.xpose.msra.mxu0 0.0
    %350 = vmatprep.subr.mxu0 0.0
    %351 = vmatpush1.xpose.msra.mxu0 0.0
    %352 = vmatprep.subr.mxu0 0.0
    %353 = vmatpush1.xpose.msra.mxu0 0.0
    %354 = vmatprep.subr.mxu0 0.0
    %355 = vmatpush1.xpose.msra.mxu0 0.0
    %356 = vmatprep.subr.mxu0 0.0
    %357 = vmatpush1.xpose.msra.mxu0 0.0
    %358 = vmatprep.subr.mxu0 0.0
    %359 = vmatpush1.xpose.msra.mxu0 0.0
    %360 = vmatprep.subr.mxu0 0.0
    %361 = vmatpush1.xpose.msra.mxu0 0.0
    %362 = vmatprep.subr.mxu0 0.0
    %363 = vmatpush1.xpose.msra.mxu0 0.0
    %364 = vmatprep.subr.mxu0 0.0
    %365 = vmatpush1.xpose.msra.mxu0 0.0
    %366 = vmatprep.subr.mxu0 0.0
    %367 = vmatpush1.xpose.msra.mxu0 0.0
    %368 = vmatprep.subr.mxu0 0.0
    %369 = vmatpush1.xpose.msra.mxu0 0.0
    %370 = vmatprep.subr.mxu0 0.0
    %371 = vmatpush1.xpose.msra.mxu0 0.0
    %372 = vmatprep.subr.mxu0 0.0
    %373 = vmatpush1.xpose.msra.mxu0 0.0
    %374 = vmatprep.subr.mxu0 0.0
    %375 = vmatpush1.xpose.msra.mxu0 0.0
    %376 = vmatprep.subr.mxu0 0.0
    %377 = vmatpush1.xpose.msra.mxu0 0.0
    %378 = vmatprep.subr.mxu0 0.0
    %379 = vmatpush1.xpose.msra.mxu0 0.0
    %380 = vmatprep.subr.mxu0 0.0
    %381 = vmatpush1.xpose.msra.mxu0 0.0
    %382 = vmatprep.subr.mxu0 0.0
    %383 = vmatpush1.xpose.msra.mxu0 0.0
    %384 = vmatprep.subr.mxu0 0.0
    %385 = vmatpush1.xpose.msra.mxu0 0.0
    %386 = vmatprep.subr.mxu0 0.0
    %387 = vmatpush1.xpose.msra.mxu0 0.0
    %388 = vmatprep.subr.mxu0 0.0
    %389 = vmatpush1.xpose.msra.mxu0 0.0
    %390 = vmatprep.subr.mxu0 0.0
    %391 = vmatpush1.xpose.msra.mxu0 0.0
    %392 = vmatprep.subr.mxu0 0.0
    %393 = vmatpush1.xpose.msra.mxu0 0.0
    %394 = vmatprep.mubr.f32.mxu0 0.0
    %395 = vmatmul.mubr.f32.gmra.mrb[0].mxu0 %v328
    %v396 = vpop.f32.mrb[0].mxu0
    %v397 = vadd.f32 0.0, %v396
    %v398 = vpop.f32.mrb[0].mxu0
    %399 = vdwg.mxu0
    %v400 = vadd.f32 %v93, %v397
    %v401 = vtanh.pop %v400
    %v402 = vmul.f32 %v401, %v231
    %v403 = vsel %vm234, %v402, 0.0
    %404 = vadd.xlane.f32.xlu0 %v403
    %v405 = vpop.xlane.xlu0 %404
    %vm406 = vcmp.eq.s32.totalorder %v125, 2
    %v407 = vsel %vm406, 1, 0
    %vm408 = vcmp.eq.s32.totalorder %v407, 1
    %v409 = vsel %vm408, %v405, 0.0
    %v410 = vadd.f32 %v326, %v409
    %v412 = vsel %vm127, %v401, 0
    %414 = vmatprep.subr.mxu0 0.0
    %415 = vmatpush1.xpose.msra.mxu0 %v132
    %416 = vmatprep.subr.mxu0 0.0
    %417 = vmatpush1.xpose.msra.mxu0 %v135
    %418 = vmatprep.subr.mxu0 0.0
    %419 = vmatpush1.xpose.msra.mxu0 %v138
    %420 = vmatprep.subr.mxu0 0.0
    %421 = vmatpush1.xpose.msra.mxu0 %v141
    %422 = vmatprep.subr.mxu0 0.0
    %423 = vmatpush1.xpose.msra.mxu0 %v144
    %424 = vmatprep.subr.mxu0 0.0
    %425 = vmatpush1.xpose.msra.mxu0 %v147
    %426 = vmatprep.subr.mxu0 0.0
    %427 = vmatpush1.xpose.msra.mxu0 %v150
    %428 = vmatprep.subr.mxu0 0.0
    %429 = vmatpush1.xpose.msra.mxu0 %v153
    %430 = vmatprep.subr.mxu0 0.0
    %431 = vmatpush1.xpose.msra.mxu0 0.0
    %432 = vmatprep.subr.mxu0 0.0
    %433 = vmatpush1.xpose.msra.mxu0 0.0
    %434 = vmatprep.subr.mxu0 0.0
    %435 = vmatpush1.xpose.msra.mxu0 0.0
    %436 = vmatprep.subr.mxu0 0.0
    %437 = vmatpush1.xpose.msra.mxu0 0.0
    %438 = vmatprep.subr.mxu0 0.0
    %439 = vmatpush1.xpose.msra.mxu0 0.0
    %440 = vmatprep.subr.mxu0 0.0
    %441 = vmatpush1.xpose.msra.mxu0 0.0
    %442 = vmatprep.subr.mxu0 0.0
    %443 = vmatpush1.xpose.msra.mxu0 0.0
    %444 = vmatprep.subr.mxu0 0.0
    %445 = vmatpush1.xpose.msra.mxu0 0.0
    %446 = vmatprep.subr.mxu0 0.0
    %447 = vmatpush1.xpose.msra.mxu0 0.0
    %448 = vmatprep.subr.mxu0 0.0
    %449 = vmatpush1.xpose.msra.mxu0 0.0
    %450 = vmatprep.subr.mxu0 0.0
    %451 = vmatpush1.xpose.msra.mxu0 0.0
    %452 = vmatprep.subr.mxu0 0.0
    %453 = vmatpush1.xpose.msra.mxu0 0.0
    %454 = vmatprep.subr.mxu0 0.0
    %455 = vmatpush1.xpose.msra.mxu0 0.0
    %456 = vmatprep.subr.mxu0 0.0
    %457 = vmatpush1.xpose.msra.mxu0 0.0
    %458 = vmatprep.subr.mxu0 0.0
    %459 = vmatpush1.xpose.msra.mxu0 0.0
    %460 = vmatprep.subr.mxu0 0.0
    %461 = vmatpush1.xpose.msra.mxu0 0.0
    %462 = vmatprep.subr.mxu0 0.0
    %463 = vmatpush1.xpose.msra.mxu0 0.0
    %464 = vmatprep.subr.mxu0 0.0
    %465 = vmatpush1.xpose.msra.mxu0 0.0
    %466 = vmatprep.subr.mxu0 0.0
    %467 = vmatpush1.xpose.msra.mxu0 0.0
    %468 = vmatprep.subr.mxu0 0.0
    %469 = vmatpush1.xpose.msra.mxu0 0.0
    %470 = vmatprep.subr.mxu0 0.0
    %471 = vmatpush1.xpose.msra.mxu0 0.0
    %472 = vmatprep.subr.mxu0 0.0
    %473 = vmatpush1.xpose.msra.mxu0 0.0
    %474 = vmatprep.subr.mxu0 0.0
    %475 = vmatpush1.xpose.msra.mxu0 0.0
    %476 = vmatprep.subr.mxu0 0.0
    %477 = vmatpush1.xpose.msra.mxu0 0.0
    %478 = vmatprep.mubr.f32.mxu0 0.0
    %479 = vmatmul.mubr.f32.gmra.mrb[0].mxu0 %v412
    %v480 = vpop.f32.mrb[0].mxu0
    %v481 = vadd.f32 0.0, %v480
    %v482 = vpop.f32.mrb[0].mxu0
    %483 = vdwg.mxu0
    %v484 = vadd.f32 %v99, %v481
    %v485 = vtanh.pop %v484
    %v486 = vmul.f32 %v485, %v231
    %v487 = vsel %vm234, %v486, 0.0
    %488 = vadd.xlane.f32.xlu0 %v487
    %v489 = vpop.xlane.xlu0 %488
    %vm490 = vcmp.eq.s32.totalorder %v125, 3
    %v491 = vsel %vm490, 1, 0
    %vm492 = vcmp.eq.s32.totalorder %v491, 1
    %v493 = vsel %vm492, %v489, 0.0
    %v494 = vadd.f32 %v410, %v493
    %v496 = vsel %vm127, %v485, 0
    %498 = vmatprep.subr.mxu0 0.0
    %499 = vmatpush1.xpose.msra.mxu0 %v132
    %500 = vmatprep.subr.mxu0 0.0
    %501 = vmatpush1.xpose.msra.mxu0 %v135
    %502 = vmatprep.subr.mxu0 0.0
    %503 = vmatpush1.xpose.msra.mxu0 %v138
    %504 = vmatprep.subr.mxu0 0.0
    %505 = vmatpush1.xpose.msra.mxu0 %v141
    %506 = vmatprep.subr.mxu0 0.0
    %507 = vmatpush1.xpose.msra.mxu0 %v144
    %508 = vmatprep.subr.mxu0 0.0
    %509 = vmatpush1.xpose.msra.mxu0 %v147
    %510 = vmatprep.subr.mxu0 0.0
    %511 = vmatpush1.xpose.msra.mxu0 %v150
    %512 = vmatprep.subr.mxu0 0.0
    %513 = vmatpush1.xpose.msra.mxu0 %v153
    %514 = vmatprep.subr.mxu0 0.0
    %515 = vmatpush1.xpose.msra.mxu0 0.0
    %516 = vmatprep.subr.mxu0 0.0
    %517 = vmatpush1.xpose.msra.mxu0 0.0
    %518 = vmatprep.subr.mxu0 0.0
    %519 = vmatpush1.xpose.msra.mxu0 0.0
    %520 = vmatprep.subr.mxu0 0.0
    %521 = vmatpush1.xpose.msra.mxu0 0.0
    %522 = vmatprep.subr.mxu0 0.0
    %523 = vmatpush1.xpose.msra.mxu0 0.0
    %524 = vmatprep.subr.mxu0 0.0
    %525 = vmatpush1.xpose.msra.mxu0 0.0
    %526 = vmatprep.subr.mxu0 0.0
    %527 = vmatpush1.xpose.msra.mxu0 0.0
    %528 = vmatprep.subr.mxu0 0.0
    %529 = vmatpush1.xpose.msra.mxu0 0.0
    %530 = vmatprep.subr.mxu0 0.0
    %531 = vmatpush1.xpose.msra.mxu0 0.0
    %532 = vmatprep.subr.mxu0 0.0
    %533 = vmatpush1.xpose.msra.mxu0 0.0
    %534 = vmatprep.subr.mxu0 0.0
    %535 = vmatpush1.xpose.msra.mxu0 0.0
    %536 = vmatprep.subr.mxu0 0.0
    %537 = vmatpush1.xpose.msra.mxu0 0.0
    %538 = vmatprep.subr.mxu0 0.0
    %539 = vmatpush1.xpose.msra.mxu0 0.0
    %540 = vmatprep.subr.mxu0 0.0
    %541 = vmatpush1.xpose.msra.mxu0 0.0
    %542 = vmatprep.subr.mxu0 0.0
    %543 = vmatpush1.xpose.msra.mxu0 0.0
    %544 = vmatprep.subr.mxu0 0.0
    %545 = vmatpush1.xpose.msra.mxu0 0.0
    %546 = vmatprep.subr.mxu0 0.0
    %547 = vmatpush1.xpose.msra.mxu0 0.0
    %548 = vmatprep.subr.mxu0 0.0
    %549 = vmatpush1.xpose.msra.mxu0 0.0
    %550 = vmatprep.subr.mxu0 0.0
    %551 = vmatpush1.xpose.msra.mxu0 0.0
    %552 = vmatprep.subr.mxu0 0.0
    %553 = vmatpush1.xpose.msra.mxu0 0.0
    %554 = vmatprep.subr.mxu0 0.0
    %555 = vmatpush1.xpose.msra.mxu0 0.0
    %556 = vmatprep.subr.mxu0 0.0
    %557 = vmatpush1.xpose.msra.mxu0 0.0
    %558 = vmatprep.subr.mxu0 0.0
    %559 = vmatpush1.xpose.msra.mxu0 0.0
    %560 = vmatprep.subr.mxu0 0.0
    %561 = vmatpush1.xpose.msra.mxu0 0.0
    %562 = vmatprep.mubr.f32.mxu0 0.0
    %563 = vmatmul.mubr.f32.gmra.mrb[0].mxu0 %v496
    %v564 = vpop.f32.mrb[0].mxu0
    %v565 = vadd.f32 0.0, %v564
    %v566 = vpop.f32.mrb[0].mxu0
    %567 = vdwg.mxu0
    %v568 = vadd.f32 %v105, %v565
    %v569 = vtanh.pop %v568
    %v570 = vmul.f32 %v569, %v231
    %v571 = vsel %vm234, %v570, 0.0
    %572 = vadd.xlane.f32.xlu0 %v571
    %v573 = vpop.xlane.xlu0 %572
    %vm574 = vcmp.eq.s32.totalorder %v125, 4
    %v575 = vsel %vm574, 1, 0
    %vm576 = vcmp.eq.s32.totalorder %v575, 1
    %v577 = vsel %vm576, %v573, 0.0
    %v578 = vadd.f32 %v494, %v577
    %v580 = vsel %vm127, %v569, 0
    %582 = vmatprep.subr.mxu0 0.0
    %583 = vmatpush1.xpose.msra.mxu0 %v132
    %584 = vmatprep.subr.mxu0 0.0
    %585 = vmatpush1.xpose.msra.mxu0 %v135
    %586 = vmatprep.subr.mxu0 0.0
    %587 = vmatpush1.xpose.msra.mxu0 %v138
    %588 = vmatprep.subr.mxu0 0.0
    %589 = vmatpush1.xpose.msra.mxu0 %v141
    %590 = vmatprep.subr.mxu0 0.0
    %591 = vmatpush1.xpose.msra.mxu0 %v144
    %592 = vmatprep.subr.mxu0 0.0
    %593 = vmatpush1.xpose.msra.mxu0 %v147
    %594 = vmatprep.subr.mxu0 0.0
    %595 = vmatpush1.xpose.msra.mxu0 %v150
    %596 = vmatprep.subr.mxu0 0.0
    %597 = vmatpush1.xpose.msra.mxu0 %v153
    %598 = vmatprep.subr.mxu0 0.0
    %599 = vmatpush1.xpose.msra.mxu0 0.0
    %600 = vmatprep.subr.mxu0 0.0
    %601 = vmatpush1.xpose.msra.mxu0 0.0
    %602 = vmatprep.subr.mxu0 0.0
    %603 = vmatpush1.xpose.msra.mxu0 0.0
    %604 = vmatprep.subr.mxu0 0.0
    %605 = vmatpush1.xpose.msra.mxu0 0.0
    %606 = vmatprep.subr.mxu0 0.0
    %607 = vmatpush1.xpose.msra.mxu0 0.0
    %608 = vmatprep.subr.mxu0 0.0
    %609 = vmatpush1.xpose.msra.mxu0 0.0
    %610 = vmatprep.subr.mxu0 0.0
    %611 = vmatpush1.xpose.msra.mxu0 0.0
    %612 = vmatprep.subr.mxu0 0.0
    %613 = vmatpush1.xpose.msra.mxu0 0.0
    %614 = vmatprep.subr.mxu0 0.0
    %615 = vmatpush1.xpose.msra.mxu0 0.0
    %616 = vmatprep.subr.mxu0 0.0
    %617 = vmatpush1.xpose.msra.mxu0 0.0
    %618 = vmatprep.subr.mxu0 0.0
    %619 = vmatpush1.xpose.msra.mxu0 0.0
    %620 = vmatprep.subr.mxu0 0.0
    %621 = vmatpush1.xpose.msra.mxu0 0.0
    %622 = vmatprep.subr.mxu0 0.0
    %623 = vmatpush1.xpose.msra.mxu0 0.0
    %624 = vmatprep.subr.mxu0 0.0
    %625 = vmatpush1.xpose.msra.mxu0 0.0
    %626 = vmatprep.subr.mxu0 0.0
    %627 = vmatpush1.xpose.msra.mxu0 0.0
    %628 = vmatprep.subr.mxu0 0.0
    %629 = vmatpush1.xpose.msra.mxu0 0.0
    %630 = vmatprep.subr.mxu0 0.0
    %631 = vmatpush1.xpose.msra.mxu0 0.0
    %632 = vmatprep.subr.mxu0 0.0
    %633 = vmatpush1.xpose.msra.mxu0 0.0
    %634 = vmatprep.subr.mxu0 0.0
    %635 = vmatpush1.xpose.msra.mxu0 0.0
    %636 = vmatprep.subr.mxu0 0.0
    %637 = vmatpush1.xpose.msra.mxu0 0.0
    %638 = vmatprep.subr.mxu0 0.0
    %639 = vmatpush1.xpose.msra.mxu0 0.0
    %640 = vmatprep.subr.mxu0 0.0
    %641 = vmatpush1.xpose.msra.mxu0 0.0
    %642 = vmatprep.subr.mxu0 0.0
    %643 = vmatpush1.xpose.msra.mxu0 0.0
    %644 = vmatprep.subr.mxu0 0.0
    %645 = vmatpush1.xpose.msra.mxu0 0.0
    %646 = vmatprep.mubr.f32.mxu0 0.0
    %647 = vmatmul.mubr.f32.gmra.mrb[0].mxu0 %v580
    %v648 = vpop.f32.mrb[0].mxu0
    %v649 = vadd.f32 0.0, %v648
    %v650 = vpop.f32.mrb[0].mxu0
    %651 = vdwg.mxu0
    %v652 = vadd.f32 %v111, %v649
    %v653 = vtanh.pop %v652
    %v654 = vmul.f32 %v653, %v231
    %v655 = vsel %vm234, %v654, 0.0
    %656 = vadd.xlane.f32.xlu0 %v655
    %v657 = vpop.xlane.xlu0 %656
    %vm658 = vcmp.eq.s32.totalorder %v125, 5
    %v659 = vsel %vm658, 1, 0
    %vm660 = vcmp.eq.s32.totalorder %v659, 1
    %v661 = vsel %vm660, %v657, 0.0
    %v662 = vadd.f32 %v578, %v661
    %v664 = vsel %vm127, %v653, 0
    %666 = vmatprep.subr.mxu0 0.0
    %667 = vmatpush1.xpose.msra.mxu0 %v132
    %668 = vmatprep.subr.mxu0 0.0
    %669 = vmatpush1.xpose.msra.mxu0 %v135
    %670 = vmatprep.subr.mxu0 0.0
    %671 = vmatpush1.xpose.msra.mxu0 %v138
    %672 = vmatprep.subr.mxu0 0.0
    %673 = vmatpush1.xpose.msra.mxu0 %v141
    %674 = vmatprep.subr.mxu0 0.0
    %675 = vmatpush1.xpose.msra.mxu0 %v144
    %676 = vmatprep.subr.mxu0 0.0
    %677 = vmatpush1.xpose.msra.mxu0 %v147
    %678 = vmatprep.subr.mxu0 0.0
    %679 = vmatpush1.xpose.msra.mxu0 %v150
    %680 = vmatprep.subr.mxu0 0.0
    %681 = vmatpush1.xpose.msra.mxu0 %v153
    %682 = vmatprep.subr.mxu0 0.0
    %683 = vmatpush1.xpose.msra.mxu0 0.0
    %684 = vmatprep.subr.mxu0 0.0
    %685 = vmatpush1.xpose.msra.mxu0 0.0
    %686 = vmatprep.subr.mxu0 0.0
    %687 = vmatpush1.xpose.msra.mxu0 0.0
    %688 = vmatprep.subr.mxu0 0.0
    %689 = vmatpush1.xpose.msra.mxu0 0.0
    %690 = vmatprep.subr.mxu0 0.0
    %691 = vmatpush1.xpose.msra.mxu0 0.0
    %692 = vmatprep.subr.mxu0 0.0
    %693 = vmatpush1.xpose.msra.mxu0 0.0
    %694 = vmatprep.subr.mxu0 0.0
    %695 = vmatpush1.xpose.msra.mxu0 0.0
    %696 = vmatprep.subr.mxu0 0.0
    %697 = vmatpush1.xpose.msra.mxu0 0.0
    %698 = vmatprep.subr.mxu0 0.0
    %699 = vmatpush1.xpose.msra.mxu0 0.0
    %700 = vmatprep.subr.mxu0 0.0
    %701 = vmatpush1.xpose.msra.mxu0 0.0
    %702 = vmatprep.subr.mxu0 0.0
    %703 = vmatpush1.xpose.msra.mxu0 0.0
    %704 = vmatprep.subr.mxu0 0.0
    %705 = vmatpush1.xpose.msra.mxu0 0.0
    %706 = vmatprep.subr.mxu0 0.0
    %707 = vmatpush1.xpose.msra.mxu0 0.0
    %708 = vmatprep.subr.mxu0 0.0
    %709 = vmatpush1.xpose.msra.mxu0 0.0
    %710 = vmatprep.subr.mxu0 0.0
    %711 = vmatpush1.xpose.msra.mxu0 0.0
    %712 = vmatprep.subr.mxu0 0.0
    %713 = vmatpush1.xpose.msra.mxu0 0.0
    %714 = vmatprep.subr.mxu0 0.0
    %715 = vmatpush1.xpose.msra.mxu0 0.0
    %716 = vmatprep.subr.mxu0 0.0
    %717 = vmatpush1.xpose.msra.mxu0 0.0
    %718 = vmatprep.subr.mxu0 0.0
    %719 = vmatpush1.xpose.msra.mxu0 0.0
    %720 = vmatprep.subr.mxu0 0.0
    %721 = vmatpush1.xpose.msra.mxu0 0.0
    %722 = vmatprep.subr.mxu0 0.0
    %723 = vmatpush1.xpose.msra.mxu0 0.0
    %724 = vmatprep.subr.mxu0 0.0
    %725 = vmatpush1.xpose.msra.mxu0 0.0
    %726 = vmatprep.subr.mxu0 0.0
    %727 = vmatpush1.xpose.msra.mxu0 0.0
    %728 = vmatprep.subr.mxu0 0.0
    %729 = vmatpush1.xpose.msra.mxu0 0.0
    %730 = vmatprep.mubr.f32.mxu0 0.0
    %731 = vmatmul.mubr.f32.gmra.mrb[0].mxu0 %v664
    %v732 = vpop.f32.mrb[0].mxu0
    %v733 = vadd.f32 0.0, %v732
    %v734 = vpop.f32.mrb[0].mxu0
    %735 = vdwg.mxu0
    %v736 = vadd.f32 %v117, %v733
    %v737 = vtanh.pop %v736
    %v738 = vmul.f32 %v737, %v231
    %v739 = vsel %vm234, %v738, 0.0
    %740 = vadd.xlane.f32.xlu0 %v739
    %v741 = vpop.xlane.xlu0 %740
    %vm742 = vcmp.eq.s32.totalorder %v125, 6
    %v743 = vsel %vm742, 1, 0
    %vm744 = vcmp.eq.s32.totalorder %v743, 1
    %v745 = vsel %vm744, %v741, 0.0
    %v746 = vadd.f32 %v662, %v745
    %v748 = vsel %vm127, %v737, 0
    %750 = vmatprep.subr.mxu0 0.0
    %751 = vmatpush1.xpose.msra.mxu0 %v132
    %752 = vmatprep.subr.mxu0 0.0
    %753 = vmatpush1.xpose.msra.mxu0 %v135
    %754 = vmatprep.subr.mxu0 0.0
    %755 = vmatpush1.xpose.msra.mxu0 %v138
    %756 = vmatprep.subr.mxu0 0.0
    %757 = vmatpush1.xpose.msra.mxu0 %v141
    %758 = vmatprep.subr.mxu0 0.0
    %759 = vmatpush1.xpose.msra.mxu0 %v144
    %760 = vmatprep.subr.mxu0 0.0
    %761 = vmatpush1.xpose.msra.mxu0 %v147
    %762 = vmatprep.subr.mxu0 0.0
    %763 = vmatpush1.xpose.msra.mxu0 %v150
    %764 = vmatprep.subr.mxu0 0.0
    %765 = vmatpush1.xpose.msra.mxu0 %v153
    %766 = vmatprep.subr.mxu0 0.0
    %767 = vmatpush1.xpose.msra.mxu0 0.0
    %768 = vmatprep.subr.mxu0 0.0
    %769 = vmatpush1.xpose.msra.mxu0 0.0
    %770 = vmatprep.subr.mxu0 0.0
    %771 = vmatpush1.xpose.msra.mxu0 0.0
    %772 = vmatprep.subr.mxu0 0.0
    %773 = vmatpush1.xpose.msra.mxu0 0.0
    %774 = vmatprep.subr.mxu0 0.0
    %775 = vmatpush1.xpose.msra.mxu0 0.0
    %776 = vmatprep.subr.mxu0 0.0
    %777 = vmatpush1.xpose.msra.mxu0 0.0
    %778 = vmatprep.subr.mxu0 0.0
    %779 = vmatpush1.xpose.msra.mxu0 0.0
    %780 = vmatprep.subr.mxu0 0.0
    %781 = vmatpush1.xpose.msra.mxu0 0.0
    %782 = vmatprep.subr.mxu0 0.0
    %783 = vmatpush1.xpose.msra.mxu0 0.0
    %784 = vmatprep.subr.mxu0 0.0
    %785 = vmatpush1.xpose.msra.mxu0 0.0
    %786 = vmatprep.subr.mxu0 0.0
    %787 = vmatpush1.xpose.msra.mxu0 0.0
    %788 = vmatprep.subr.mxu0 0.0
    %789 = vmatpush1.xpose.msra.mxu0 0.0
    %790 = vmatprep.subr.mxu0 0.0
    %791 = vmatpush1.xpose.msra.mxu0 0.0
    %792 = vmatprep.subr.mxu0 0.0
    %793 = vmatpush1.xpose.msra.mxu0 0.0
    %794 = vmatprep.subr.mxu0 0.0
    %795 = vmatpush1.xpose.msra.mxu0 0.0
    %796 = vmatprep.subr.mxu0 0.0
    %797 = vmatpush1.xpose.msra.mxu0 0.0
    %798 = vmatprep.subr.mxu0 0.0
    %799 = vmatpush1.xpose.msra.mxu0 0.0
    %800 = vmatprep.subr.mxu0 0.0
    %801 = vmatpush1.xpose.msra.mxu0 0.0
    %802 = vmatprep.subr.mxu0 0.0
    %803 = vmatpush1.xpose.msra.mxu0 0.0
    %804 = vmatprep.subr.mxu0 0.0
    %805 = vmatpush1.xpose.msra.mxu0 0.0
    %806 = vmatprep.subr.mxu0 0.0
    %807 = vmatpush1.xpose.msra.mxu0 0.0
    %808 = vmatprep.subr.mxu0 0.0
    %809 = vmatpush1.xpose.msra.mxu0 0.0
    %810 = vmatprep.subr.mxu0 0.0
    %811 = vmatpush1.xpose.msra.mxu0 0.0
    %812 = vmatprep.subr.mxu0 0.0
    %813 = vmatpush1.xpose.msra.mxu0 0.0
    %814 = vmatprep.mubr.f32.mxu0 0.0
    %815 = vmatmul.mubr.f32.gmra.mrb[0].mxu0 %v748
    %v816 = vpop.f32.mrb[0].mxu0
    %v817 = vadd.f32 0.0, %v816
    %v818 = vpop.f32.mrb[0].mxu0
    %819 = vdwg.mxu0
    %v820 = vadd.f32 %v123, %v817
    %v821 = vtanh.pop %v820
    %v822 = vmul.f32 %v821, %v231
    %v823 = vsel %vm234, %v822, 0.0
    %824 = vadd.xlane.f32.xlu0 %v823
    %v825 = vpop.xlane.xlu0 %824
    %vm826 = vcmp.eq.s32.totalorder %v125, 7
    %v827 = vsel %vm826, 1, 0
    %vm828 = vcmp.eq.s32.totalorder %v827, 1
    %v829 = vsel %vm828, %v825, 0.0
    %v830 = vadd.f32 %v746, %v829
    %831 = vst.msk [vmem:[#allocation7] sm:$0x3] %vm234, %v821
    %v832 = vld [vmem:[#allocation2] sm:$0x1]
    %v834 = vlaneseq
    %v835 = vshrl.u32 %v834, 7
    %v836 = vsub.s32 0, %v835
    %v837 = vrot.slane %v832, %v836
    %838 = vset.pattern.permute.xlu0 0
    %839 = vperm.xlu0 %838, %v837
    %v840 = vpop.permute.xlu0 %839
    %v842 = vadd.f32 %v830, %v840
    %vm843 = vcmask 58368
    %844 = vst.msk [vmem:[#allocation6] sm:$0x3] %vm843, %v842
    // Predicated region
    $region38: #{rnn_forward.1} parent=1 // pred_check
      _
    $region39: #{rnn_forward.1} parent=1 // pred_check_branch
      %846 = sbr.rel (0) target = $region41
    $region40: #{rnn_forward.1} parent=1 // pred_region
      %s848 = ssub.s32 32, 32
      %849 = vsyncadd [#allocation5], %s848
      %s851 = sshll.u32 [#allocation6], 4
      %s852 = int_to_ptr.vmem [resolvable:$true] %s851
      %854 = dma.vmem_to_hbm [thread:$0]  %s852, 32, %s8, [#allocation5]
    $region41: #{rnn_forward.1} parent=1 // pred_fallthru
      _
    // Predicated region
    $region42: #{rnn_forward.1} parent=1 // pred_check
      _
    $region43: #{rnn_forward.1} parent=1 // pred_check_branch
      %856 = sbr.rel (0) target = $region45
    $region44: #{rnn_forward.1} parent=1 // pred_region
      %s858 = ssub.s32 32, 32
      %859 = vsyncadd [#allocation8], %s858
      %s861 = sshll.u32 [#allocation7], 4
      %s862 = int_to_ptr.vmem [resolvable:$true] %s861
      %864 = dma.vmem_to_hbm [thread:$0]  %s862, 32, %s9, [#allocation8]
    $region45: #{rnn_forward.1} parent=1 // pred_fallthru
      _
    // Predicated region
    $region46: #{rnn_forward.1} parent=1 // pred_check
      _
    $region47: #{rnn_forward.1} parent=1 // pred_check_branch
      %866 = sbr.rel (0) target = $region49
    $region48: #{rnn_forward.1} parent=1 // pred_region
      %867 = dma.done [#allocation5], 32
    $region49: #{rnn_forward.1} parent=1 // pred_fallthru
      _
    // Predicated region
    $region50: #{rnn_forward.1} parent=1 // pred_check
      _
    $region51: #{rnn_forward.1} parent=1 // pred_check_branch
      %869 = sbr.rel (0) target = $region53
    $region52: #{rnn_forward.1} parent=1 // pred_region
      %870 = dma.done [#allocation8], 32
    $region53: #{rnn_forward.1} parent=1 // pred_fallthru
      _
    %871 = vsyncpa [#allocation4], 1
    %872 = vsyncpa [#allocation5], 1
    %873 = vsyncpa [#allocation8], 1

</llo_original>
